<compile_context>
chip_gen: v7x
topology: tpu7x:2x2x1
jax: 0.10.0
libtpu: 0.0.40
codegen_flags: <defaults>
</compile_context>

<pallas_src>
import numpy as np

import jax
import jax.numpy as jnp
from jax import lax
from jax.experimental import pallas as pl
from jax.experimental.pallas import tpu as pltpu


# ------------------------------- kernels --------------------------------------

def _pos_enc_kernel_broadcast(h_ref, w_ref, o_ref):
    # h_ref: (th, C), w_ref: (tw, C), o_ref: (th, tw, C)
    # out[i, j, :] = h[i, :] + w[j, :]  -- one broadcast add, one big store.
    o_ref[...] = (h_ref[...][:, None, :] + w_ref[...][None, :, :]).astype(o_ref.dtype)


def _pos_enc_kernel_rowwise(h_ref, w_ref, o_ref):
    # For big tiles: write one (tw, C) row-slab at a time so vreg pressure is
    # ~tw*C/1024 regs instead of a (th, tw, C) live value spilling through VMEM.
    w = w_ref[...]
    th = o_ref.shape[0]

    def body(i, carry):
        o_ref[i] = (h_ref[i][None, :] + w).astype(o_ref.dtype)
        return carry

    lax.fori_loop(0, th, body, 0, unroll=(th <= 16))


# ------------------------------ tiling logic -----------------------------------

_VREG_FILE_BYTES = 256 << 10       # 64 vregs x 4 KiB: cap for full-broadcast path
_MEGACORE_SLAB_BYTES = 1 << 20     # only split a single slab when it is >= 1 MiB
_MEGACORE_MIN_HALF = 512 << 10     # ... and each resulting slab stays >= 512 KiB


def _block_sizes(n):
    """Valid block sizes along a tiled (sublane) axis: divide n and either equal
    n or be a multiple of 8. Descending (prefer big, contiguous blocks)."""
    return [t for t in range(n, 0, -1) if n % t == 0 and (t == n or t % 8 == 0)] or [n]


def _resident_bytes(th, tw, C, out_itemsize):
    """VMEM actually resident per grid step: double-buffered output tile,
    f32 broadcast intermediate, width table (single-buffered), 2x height tile."""
    out_tile = th * tw * C * out_itemsize
    f32_tmp = th * tw * C * 4
    return 2 * out_tile + f32_tmp + tw * C * 4 + 2 * th * C * 4


def _choose_tiles(H, W, C, out_itemsize, vmem_budget_bytes):
    th_opts, tw_opts = _block_sizes(H), _block_sizes(W)
    th, tw = th_opts[-1], tw_opts[-1]               # smallest legal fallback
    found = False
    for cand_tw in tw_opts:                          # prefer full-W contiguous slabs
        for cand_th in th_opts:
            if _resident_bytes(cand_th, cand_tw, C, out_itemsize) <= vmem_budget_bytes:
                th, tw = cand_th, cand_tw
                found = True
                break
        if found:
            break

    # Megacore (v7x): split a single big slab into >= 2 steps only when each
    # slab still amortizes the ~0.35 us/step overhead; tiny outputs keep (1, 1).
    slab = th * tw * C * out_itemsize
    if H // th == 1 and W // tw == 1 and slab >= _MEGACORE_SLAB_BYTES:
        for cand_th in th_opts:
            if H // cand_th >= 2 and cand_th * tw * C * out_itemsize >= _MEGACORE_MIN_HALF:
                th = cand_th
                break
    return th, tw


# -------------------------------- wrapper ---------------------------------------

def image_position_encoding(batch_size, height_embs, width_embs,
                            out_dtype=None, vmem_budget_bytes=8 << 20):
    """Pallas implementation of ImagePositionEncoding.forward (colors=None).

    height_embs: [H, C] or [1, H, C]; width_embs: [W, C] or [1, W, C].
    Returns [batch_size, H*W, C].
    """
    # TODO(synk): the `colors is not None` branch of the PyTorch module calls
    # repeat_interleave with dim=H*W (out of range) and cannot execute as
    # written, so only the colors=None path is ported.
    if height_embs.ndim == 3:
        height_embs = height_embs[0]
    if width_embs.ndim == 3:
        width_embs = width_embs[0]
    H, C = height_embs.shape
    W, C2 = width_embs.shape
    assert C == C2, "height/width embeddings must share num_channels"

    out_dtype = jnp.dtype(out_dtype or height_embs.dtype)
    th, tw = _choose_tiles(H, W, C, out_dtype.itemsize, vmem_budget_bytes)
    gh, gw = H // th, W // tw

    # TODO(synk): if C is ever not a multiple of 128, present the output as
    # (H, W*C) blocks for lane-dense stores; default C=128 is already dense.

    rowwise = th * tw * C * 4 > _VREG_FILE_BYTES
    kernel = _pos_enc_kernel_rowwise if rowwise else _pos_enc_kernel_broadcast

    # Single-buffer tables whose block index never changes across the grid.
    h_spec = pl.BlockSpec((th, C), lambda i, j: (i, 0),
                          **({"pipeline_mode": pl.Buffered(1)} if gh == 1 else {}))
    w_spec = pl.BlockSpec((tw, C), lambda i, j: (j, 0),
                          **({"pipeline_mode": pl.Buffered(1)} if gw == 1 else {}))

    vmem_limit = int(min(max(2 * _resident_bytes(th, tw, C, out_dtype.itemsize)
                             + (2 << 20), 16 << 20), 32 << 20))

    out3 = pl.pallas_call(
        kernel,
        out_shape=jax.ShapeDtypeStruct((H, W, C), out_dtype),
        grid=(gh, gw),
        in_specs=[h_spec, w_spec],
        out_specs=pl.BlockSpec((th, tw, C), lambda i, j: (i, j, 0)),
        compiler_params=pltpu.CompilerParams(
            dimension_semantics=("parallel", "parallel"),
            vmem_limit_bytes=vmem_limit,
        ),
        cost_estimate=pl.CostEstimate(
            flops=H * W * C,
            transcendentals=0,
            bytes_accessed=(H * C + W * C) * height_embs.dtype.itemsize
            + H * W * C * out_dtype.itemsize,
        ),
    )(height_embs, width_embs)

    pos = out3.reshape(H * W, C)
    # Batch is a pure broadcast in the original module; keep it lazy so the
    # B-fold copy is never written back to HBM (it fuses into consumers).
    return jnp.broadcast_to(pos[None], (batch_size, H * W, C))


# ----------------------------- reference (plain JAX) ----------------------------

def _reference(batch_size, height_embs, width_embs):
    H, C = height_embs.shape
    W, _ = width_embs.shape
    pos = jnp.repeat(height_embs, W, axis=0) + jnp.tile(width_embs, (H, 1))
    return jnp.broadcast_to(pos[None], (batch_size, H * W, C))


# ----------------------------------- main ---------------------------------------

if __name__ == "__main__":
    key = jax.random.PRNGKey(0)

    batch_size = 2
    height, width, num_channels = 16, 16, 128
    init_scale = 0.02

    k_h, k_w = jax.random.split(key)
    # nn.init.trunc_normal_(std=init_scale): truncated normal in [-2s, 2s].
    height_embs = init_scale * jax.random.truncated_normal(
        k_h, -2.0, 2.0, (height, num_channels), jnp.float32)
    width_embs = init_scale * jax.random.truncated_normal(
        k_w, -2.0, 2.0, (width, num_channels), jnp.float32)

    out = image_position_encoding(batch_size, height_embs, width_embs)
    out = jax.block_until_ready(out)

    ref = _reference(batch_size, height_embs, width_embs)
    assert out.shape == (batch_size, height * width, num_channels)
    np.testing.assert_allclose(np.asarray(out), np.asarray(ref),
                               rtol=1e-6, atol=1e-6)

    print("KERNEL_OK")
</pallas_src>

<mosaic_0001>
module attributes {stable_mosaic.version = 11 : i64} {
  func.func @_pos_enc_kernel_broadcast(%arg0: i32, %arg1: i32, %arg2: memref<16x128xf32, #tpu.memory_space<vmem>>, %arg3: memref<16x128xf32, #tpu.memory_space<vmem>>, %arg4: memref<16x16x128xf32, #tpu.memory_space<vmem>>) attributes {dimension_semantics = [#tpu.dimension_semantics<parallel>, #tpu.dimension_semantics<parallel>], iteration_bounds = array<i64: 1, 1>, scalar_prefetch = 0 : i64, scratch_operands = 0 : i64, tpu.core_type = #tpu.core_type<tc>, window_params = [{pipeline_mode = #tpu.pipeline_mode<synchronous>, transform_indices = @transform_0, window_bounds = array<i64: 16, 128>}, {pipeline_mode = #tpu.pipeline_mode<synchronous>, transform_indices = @transform_1, window_bounds = array<i64: 16, 128>}, {transform_indices = @transform_2, window_bounds = array<i64: 16, 16, 128>}]} {
    %c0 = arith.constant 0 : index
    %c0_0 = arith.constant 0 : index
    %0 = vector.load %arg2[%c0, %c0_0] : memref<16x128xf32, #tpu.memory_space<vmem>>, vector<16x128xf32>
    %1 = vector.shape_cast %0 : vector<16x128xf32> to vector<16x1x128xf32>
    %c0_1 = arith.constant 0 : index
    %c0_2 = arith.constant 0 : index
    %2 = vector.load %arg3[%c0_1, %c0_2] : memref<16x128xf32, #tpu.memory_space<vmem>>, vector<16x128xf32>
    %3 = vector.shape_cast %2 : vector<16x128xf32> to vector<1x16x128xf32>
    %4 = vector.broadcast %1 : vector<16x1x128xf32> to vector<16x16x128xf32>
    %5 = vector.broadcast %3 : vector<1x16x128xf32> to vector<16x16x128xf32>
    %6 = arith.addf %4, %5 : vector<16x16x128xf32>
    %c0_3 = arith.constant 0 : index
    %c0_4 = arith.constant 0 : index
    %c0_5 = arith.constant 0 : index
    %7 = vector.load %arg4[%c0_3, %c0_4, %c0_5] : memref<16x16x128xf32, #tpu.memory_space<vmem>>, vector<16x16x128xf32>
    tpu.vector_store %arg4[%c0_3, %c0_4, %c0_5], %6 {strides = array<i32>} : memref<16x16x128xf32, #tpu.memory_space<vmem>>, vector<16x16x128xf32>,
    return
  }
  func.func @transform_0(%arg0: i32, %arg1: i32) -> (i32, i32) {
    %c0_i32 = arith.constant 0 : i32
    %c0_i32_0 = arith.constant 0 : i32
    return %arg0, %c0_i32 : i32, i32
  }
  func.func @transform_1(%arg0: i32, %arg1: i32) -> (i32, i32) {
    %c0_i32 = arith.constant 0 : i32
    %c0_i32_0 = arith.constant 0 : i32
    return %arg1, %c0_i32 : i32, i32
  }
  func.func @transform_2(%arg0: i32, %arg1: i32) -> (i32, i32, i32) {
    %c0_i32 = arith.constant 0 : i32
    %c0_i32_0 = arith.constant 0 : i32
    return %arg0, %arg1, %c0_i32 : i32, i32, i32
  }
}

</mosaic_0001>

<llo_original>
// kernel: tpu_custom_call.1
$region0: #{tpu_custom_call.1}
  #allocation0 [shape = 'u32[]', space=smem, size = 0x4, offset = 0x4, fixed_abs, tag = 'smem constant byte address 0x4 - core index']
  #allocation1 [shape = 'u32[144,128]{1,0:T(1,128)}', space=vmem, size = 0x12000, scoped, tag = 'internal scratch']
  %s0 = inlined_call_operand.hbm [shape: f32[16,128], index: 0, kind: input, shape index: {}]
  %s1 = inlined_call_operand.hbm [shape: f32[16,128], index: 1, kind: input, shape index: {}]
  %s2 = inlined_call_operand.hbm [shape: f32[16,16,128], index: 2, kind: output, shape index: {}]
  %s3 = sld [smem:[#allocation0]]
  $region26: #{tpu_custom_call.1} parent=0
    _
  %s5 = ssub.s32 1, %s3
  %s6 = scalar_select 0, %s5, %s3
  $region1: #{tpu_custom_call.1} parent=0
    #allocation2 [shape = 'u8[8192]{0}', space=vmem, size = 0x2000, scoped, tag = 'input window, operand 0, single buffered']
    #allocation3 [shape = 's32[1]{0}', space=sflag, size = 0x4, scoped, tag = 'scoped memory for tpu_custom_call.1']
    #allocation4 [shape = 's32[1]{0}', space=sflag, size = 0x4, scoped, tag = 'scoped memory for tpu_custom_call.1']
    #allocation5 [shape = 'u8[8192]{0}', space=vmem, size = 0x2000, scoped, tag = 'input window, operand 1, single buffered']
    #allocation6 [shape = 's32[1]{0}', space=sflag, size = 0x4, scoped, tag = 'scoped memory for tpu_custom_call.1']
    #allocation7 [shape = 'u8[131072]{0}', space=vmem, size = 0x20000, scoped, tag = 'output window, operand 0, single buffered']
    %7 = vsyncpa [#allocation3], 0
    %8 = vsyncpa [#allocation6], 0
    %9 = vsyncpa [#allocation4], 0
    // Predicated region
    $region2: #{tpu_custom_call.1} parent=1 // pred_check
      _
    $region3: #{tpu_custom_call.1} parent=1 // pred_check_branch
      %11 = sbr.rel (0) target = $region5
    $region4: #{tpu_custom_call.1} parent=1 // pred_region
      %s13 = ssub.s32 256, 256
      %14 = vsyncadd [#allocation3], %s13
      %s15 = sshll.u32 [#allocation2], 4
      %s16 = int_to_ptr.vmem [resolvable:$true] %s15
      %21 = dma.hbm_to_vmem [thread:$0]  %s0, 256, %s16, [#allocation3], 128, 128, 8
    $region5: #{tpu_custom_call.1} parent=1 // pred_fallthru
      _
    // Predicated region
    $region6: #{tpu_custom_call.1} parent=1 // pred_check
      _
    $region7: #{tpu_custom_call.1} parent=1 // pred_check_branch
      %23 = sbr.rel (0) target = $region9
    $region8: #{tpu_custom_call.1} parent=1 // pred_region
      %s25 = ssub.s32 256, 256
      %26 = vsyncadd [#allocation6], %s25
      %s27 = sshll.u32 [#allocation5], 4
      %s28 = int_to_ptr.vmem [resolvable:$true] %s27
      %33 = dma.hbm_to_vmem [thread:$0]  %s1, 256, %s28, [#allocation6], 128, 128, 8
    $region9: #{tpu_custom_call.1} parent=1 // pred_fallthru
      _
    // Predicated region
    $region10: #{tpu_custom_call.1} parent=1 // pred_check
      _
    $region11: #{tpu_custom_call.1} parent=1 // pred_check_branch
      %35 = sbr.rel (0) target = $region13
    $region12: #{tpu_custom_call.1} parent=1 // pred_region
      %36 = dma.done [#allocation3], 256
    $region13: #{tpu_custom_call.1} parent=1 // pred_fallthru
      _
    // Predicated region
    $region14: #{tpu_custom_call.1} parent=1 // pred_check
      _
    $region15: #{tpu_custom_call.1} parent=1 // pred_check_branch
      %38 = sbr.rel (0) target = $region17
    $region16: #{tpu_custom_call.1} parent=1 // pred_region
      %39 = dma.done [#allocation6], 256
    $region17: #{tpu_custom_call.1} parent=1 // pred_fallthru
      _
    %v40 = vld [vmem:[#allocation2] sm:$0xff]
    %v41 = vld [vmem:[#allocation2 + $0x8] sm:$0xff]
    %v44 = vcombine.high %v40, %v40
    %v46 = vunpack.c.l.s4 1966171168
    %v47 = vunpack.c.0.s8 %v46
    %v48 = vlaneseq
    %v49 = vshrl.u32 %v48, 7
    %v50 = vsub.s32 %v47, %v49
    %v51 = vrot.slane %v40, %v50
    %v53 = vunpack.c.l.s4 1966171168
    %v54 = vunpack.c.0.s8 %v53
    %v55 = vlaneseq
    %v56 = vshrl.u32 %v55, 7
    %v57 = vsub.s32 %v54, %v56
    %v58 = vrot.slane %v44, %v57
    %v59 = vcombine.high %v51, %v51
    %v60 = vcombine.high %v58, %v58
    %v62 = vunpack.c.l.s4 1966171168
    %v63 = vunpack.c.0.s8 %v62
    %v64 = vlaneseq
    %v65 = vshrl.u32 %v64, 7
    %v66 = vsub.s32 %v63, %v65
    %v67 = vrot.slane %v51, %v66
    %v69 = vunpack.c.l.s4 1966171168
    %v70 = vunpack.c.0.s8 %v69
    %v71 = vlaneseq
    %v72 = vshrl.u32 %v71, 7
    %v73 = vsub.s32 %v70, %v72
    %v74 = vrot.slane %v58, %v73
    %v76 = vunpack.c.l.s4 1966171168
    %v77 = vunpack.c.0.s8 %v76
    %v78 = vlaneseq
    %v79 = vshrl.u32 %v78, 7
    %v80 = vsub.s32 %v77, %v79
    %v81 = vrot.slane %v59, %v80
    %v83 = vunpack.c.l.s4 1966171168
    %v84 = vunpack.c.0.s8 %v83
    %v85 = vlaneseq
    %v86 = vshrl.u32 %v85, 7
    %v87 = vsub.s32 %v84, %v86
    %v88 = vrot.slane %v60, %v87
    %v89 = vcombine.high %v67, %v67
    %v90 = vcombine.high %v74, %v74
    %v91 = vcombine.high %v81, %v81
    %v92 = vcombine.high %v88, %v88
    %v93 = vcombine.high %v41, %v41
    %v95 = vunpack.c.l.s4 1966171168
    %v96 = vunpack.c.0.s8 %v95
    %v97 = vlaneseq
    %v98 = vshrl.u32 %v97, 7
    %v99 = vsub.s32 %v96, %v98
    %v100 = vrot.slane %v41, %v99
    %v102 = vunpack.c.l.s4 1966171168
    %v103 = vunpack.c.0.s8 %v102
    %v104 = vlaneseq
    %v105 = vshrl.u32 %v104, 7
    %v106 = vsub.s32 %v103, %v105
    %v107 = vrot.slane %v93, %v106
    %v108 = vcombine.high %v100, %v100
    %v109 = vcombine.high %v107, %v107
    %v111 = vunpack.c.l.s4 1966171168
    %v112 = vunpack.c.0.s8 %v111
    %v113 = vlaneseq
    %v114 = vshrl.u32 %v113, 7
    %v115 = vsub.s32 %v112, %v114
    %v116 = vrot.slane %v100, %v115
    %v118 = vunpack.c.l.s4 1966171168
    %v119 = vunpack.c.0.s8 %v118
    %v120 = vlaneseq
    %v121 = vshrl.u32 %v120, 7
    %v122 = vsub.s32 %v119, %v121
    %v123 = vrot.slane %v107, %v122
    %v125 = vunpack.c.l.s4 1966171168
    %v126 = vunpack.c.0.s8 %v125
    %v127 = vlaneseq
    %v128 = vshrl.u32 %v127, 7
    %v129 = vsub.s32 %v126, %v128
    %v130 = vrot.slane %v108, %v129
    %v132 = vunpack.c.l.s4 1966171168
    %v133 = vunpack.c.0.s8 %v132
    %v134 = vlaneseq
    %v135 = vshrl.u32 %v134, 7
    %v136 = vsub.s32 %v133, %v135
    %v137 = vrot.slane %v109, %v136
    %v138 = vcombine.high %v116, %v116
    %v139 = vcombine.high %v123, %v123
    %v140 = vcombine.high %v130, %v130
    %v141 = vcombine.high %v137, %v137
    %v142 = vld [vmem:[#allocation5] sm:$0xff]
    %v143 = vld [vmem:[#allocation5 + $0x8] sm:$0xff]
    %v144 = vlaneseq
    %v145 = vshrl.u32 %v144, 7
    %v146 = vsub.s32 0, %v145
    %v147 = vrot.slane %v67, %v146
    %v148 = vlaneseq
    %v149 = vshrl.u32 %v148, 7
    %v150 = vsub.s32 0, %v149
    %v151 = vrot.slane %v81, %v150
    %v152 = vlaneseq
    %v153 = vshrl.u32 %v152, 7
    %v154 = vsub.s32 0, %v153
    %v155 = vrot.slane %v89, %v154
    %v156 = vlaneseq
    %v157 = vshrl.u32 %v156, 7
    %v158 = vsub.s32 0, %v157
    %v159 = vrot.slane %v91, %v158
    %v160 = vlaneseq
    %v161 = vshrl.u32 %v160, 7
    %v162 = vsub.s32 0, %v161
    %v163 = vrot.slane %v74, %v162
    %v164 = vlaneseq
    %v165 = vshrl.u32 %v164, 7
    %v166 = vsub.s32 0, %v165
    %v167 = vrot.slane %v88, %v166
    %v168 = vlaneseq
    %v169 = vshrl.u32 %v168, 7
    %v170 = vsub.s32 0, %v169
    %v171 = vrot.slane %v90, %v170
    %v172 = vlaneseq
    %v173 = vshrl.u32 %v172, 7
    %v174 = vsub.s32 0, %v173
    %v175 = vrot.slane %v92, %v174
    %v176 = vlaneseq
    %v177 = vshrl.u32 %v176, 7
    %v178 = vsub.s32 0, %v177
    %v179 = vrot.slane %v116, %v178
    %v180 = vlaneseq
    %v181 = vshrl.u32 %v180, 7
    %v182 = vsub.s32 0, %v181
    %v183 = vrot.slane %v130, %v182
    %v184 = vlaneseq
    %v185 = vshrl.u32 %v184, 7
    %v186 = vsub.s32 0, %v185
    %v187 = vrot.slane %v138, %v186
    %v188 = vlaneseq
    %v189 = vshrl.u32 %v188, 7
    %v190 = vsub.s32 0, %v189
    %v191 = vrot.slane %v140, %v190
    %v192 = vlaneseq
    %v193 = vshrl.u32 %v192, 7
    %v194 = vsub.s32 0, %v193
    %v195 = vrot.slane %v123, %v194
    %v196 = vlaneseq
    %v197 = vshrl.u32 %v196, 7
    %v198 = vsub.s32 0, %v197
    %v199 = vrot.slane %v137, %v198
    %v200 = vlaneseq
    %v201 = vshrl.u32 %v200, 7
    %v202 = vsub.s32 0, %v201
    %v203 = vrot.slane %v139, %v202
    %v204 = vlaneseq
    %v205 = vshrl.u32 %v204, 7
    %v206 = vsub.s32 0, %v205
    %v207 = vrot.slane %v141, %v206
    %v224 = vadd.f32 %v147, %v142
    %v225 = vadd.f32 %v147, %v143
    %v226 = vadd.f32 %v151, %v142
    %v227 = vadd.f32 %v151, %v143
    %v228 = vadd.f32 %v155, %v142
    %v229 = vadd.f32 %v155, %v143
    %v230 = vadd.f32 %v159, %v142
    %v231 = vadd.f32 %v159, %v143
    %v232 = vadd.f32 %v163, %v142
    %v233 = vadd.f32 %v163, %v143
    %v234 = vadd.f32 %v167, %v142
    %v235 = vadd.f32 %v167, %v143
    %v236 = vadd.f32 %v171, %v142
    %v237 = vadd.f32 %v171, %v143
    %v238 = vadd.f32 %v175, %v142
    %v239 = vadd.f32 %v175, %v143
    %v240 = vadd.f32 %v179, %v142
    %v241 = vadd.f32 %v179, %v143
    %v242 = vadd.f32 %v183, %v142
    %v243 = vadd.f32 %v183, %v143
    %v244 = vadd.f32 %v187, %v142
    %v245 = vadd.f32 %v187, %v143
    %v246 = vadd.f32 %v191, %v142
    %v247 = vadd.f32 %v191, %v143
    %v248 = vadd.f32 %v195, %v142
    %v249 = vadd.f32 %v195, %v143
    %v250 = vadd.f32 %v199, %v142
    %v251 = vadd.f32 %v199, %v143
    %v252 = vadd.f32 %v203, %v142
    %v253 = vadd.f32 %v203, %v143
    %v254 = vadd.f32 %v207, %v142
    %v255 = vadd.f32 %v207, %v143
    %256 = vst [vmem:[#allocation7] sm:$0xff] %v224
    %257 = vst [vmem:[#allocation7 + $0x8] sm:$0xff] %v225
    %258 = vst [vmem:[#allocation7 + $0x10] sm:$0xff] %v226
    %259 = vst [vmem:[#allocation7 + $0x18] sm:$0xff] %v227
    %260 = vst [vmem:[#allocation7 + $0x20] sm:$0xff] %v228
    %261 = vst [vmem:[#allocation7 + $0x28] sm:$0xff] %v229
    %262 = vst [vmem:[#allocation7 + $0x30] sm:$0xff] %v230
    %263 = vst [vmem:[#allocation7 + $0x38] sm:$0xff] %v231
    %264 = vst [vmem:[#allocation7 + $0x40] sm:$0xff] %v232
    %265 = vst [vmem:[#allocation7 + $0x48] sm:$0xff] %v233
    %266 = vst [vmem:[#allocation7 + $0x50] sm:$0xff] %v234
    %267 = vst [vmem:[#allocation7 + $0x58] sm:$0xff] %v235
    %268 = vst [vmem:[#allocation7 + $0x60] sm:$0xff] %v236
    %269 = vst [vmem:[#allocation7 + $0x68] sm:$0xff] %v237
    %270 = vst [vmem:[#allocation7 + $0x70] sm:$0xff] %v238
    %271 = vst [vmem:[#allocation7 + $0x78] sm:$0xff] %v239
    %272 = vst [vmem:[#allocation7 + $0x80] sm:$0xff] %v240
    %273 = vst [vmem:[#allocation7 + $0x88] sm:$0xff] %v241
    %274 = vst [vmem:[#allocation7 + $0x90] sm:$0xff] %v242
    %275 = vst [vmem:[#allocation7 + $0x98] sm:$0xff] %v243
    %276 = vst [vmem:[#allocation7 + $0xa0] sm:$0xff] %v244
    %277 = vst [vmem:[#allocation7 + $0xa8] sm:$0xff] %v245
    %278 = vst [vmem:[#allocation7 + $0xb0] sm:$0xff] %v246
    %279 = vst [vmem:[#allocation7 + $0xb8] sm:$0xff] %v247
    %280 = vst [vmem:[#allocation7 + $0xc0] sm:$0xff] %v248
    %281 = vst [vmem:[#allocation7 + $0xc8] sm:$0xff] %v249
    %282 = vst [vmem:[#allocation7 + $0xd0] sm:$0xff] %v250
    %283 = vst [vmem:[#allocation7 + $0xd8] sm:$0xff] %v251
    %284 = vst [vmem:[#allocation7 + $0xe0] sm:$0xff] %v252
    %285 = vst [vmem:[#allocation7 + $0xe8] sm:$0xff] %v253
    %286 = vst [vmem:[#allocation7 + $0xf0] sm:$0xff] %v254
    %287 = vst [vmem:[#allocation7 + $0xf8] sm:$0xff] %v255
    // Predicated region
    $region18: #{tpu_custom_call.1} parent=1 // pred_check
      _
    $region19: #{tpu_custom_call.1} parent=1 // pred_check_branch
      %289 = sbr.rel (0) target = $region21
    $region20: #{tpu_custom_call.1} parent=1 // pred_region
      %s291 = ssub.s32 4096, 4096
      %292 = vsyncadd [#allocation4], %s291
      %s293 = sshll.u32 [#allocation7], 4
      %s294 = int_to_ptr.vmem [resolvable:$true] %s293
      %299 = dma.vmem_to_hbm [thread:$0]  %s294, 4096, %s2, [#allocation4], 128, 128, 8
    $region21: #{tpu_custom_call.1} parent=1 // pred_fallthru
      _
    // Predicated region
    $region22: #{tpu_custom_call.1} parent=1 // pred_check
      _
    $region23: #{tpu_custom_call.1} parent=1 // pred_check_branch
      %301 = sbr.rel (0) target = $region25
    $region24: #{tpu_custom_call.1} parent=1 // pred_region
      %302 = dma.done [#allocation4], 4096
    $region25: #{tpu_custom_call.1} parent=1 // pred_fallthru
      _
    %303 = vsyncpa [#allocation3], 1
    %304 = vsyncpa [#allocation6], 1
    %305 = vsyncpa [#allocation4], 1

</llo_original>
